<compile_context>
chip_gen: v6e
topology: v6e:2x2x1
jax: 0.10.0
libtpu: 0.0.40
codegen_flags: <defaults>
</compile_context>

<pallas_src>
import functools

import jax
import jax.numpy as jnp
from jax.experimental import pallas as pl
from jax.experimental.pallas import tpu as pltpu

_LANE = 128                          # lane width (last dim)
_VMEM_BUDGET = 40 * 1024 * 1024      # working-set budget used for tile sizing
_VMEM_LIMIT_CAP = 48 * 1024 * 1024   # safe scoped-VMEM request on v5e/v6e/v7x


def _round_up(x, m):
    return ((x + m - 1) // m) * m


def _linear_probe_kernel(x_ref, w_ref, b_ref, o_ref):
    # x arrives in its original dtype; cast to bf16 on the VPU (idle slot on a
    # memory-bound kernel) right before the MXU dot.  f32 accumulation, bias
    # added in f32, lane-dense f32 stores (C_pad is a multiple of 128).
    x = x_ref[...].astype(jnp.bfloat16)
    acc = jnp.dot(x, w_ref[...], preferred_element_type=jnp.float32)
    o_ref[...] = (acc + b_ref[...]).astype(o_ref.dtype)


def prepare_linear_probe_params(weight, bias):
    """One-time layout prep (call at parameter-init time, not per forward).

    weight: (num_classes, embed_dim) f32   (PyTorch nn.Linear convention)
    bias:   (num_classes,)           f32
    returns:
      w_t: (embed_dim, C_pad) bf16  -- pre-transposed, class dim padded to 128
      b2:  (1, C_pad)        f32    -- bias zero-padded to match
    """
    C, D = weight.shape
    C_pad = _round_up(C, _LANE)
    w_t = jnp.zeros((D, C_pad), dtype=jnp.bfloat16)
    w_t = w_t.at[:, :C].set(weight.T.astype(jnp.bfloat16))
    b2 = jnp.zeros((1, C_pad), dtype=jnp.float32)
    b2 = b2.at[:, :C].set(bias.astype(jnp.float32))
    return w_t, b2


def _resident_spec(shape):
    """BlockSpec for an operand that stays resident in VMEM (constant index_map).

    Single-buffered when the installed JAX supports pipeline_mode; otherwise
    the plain spec (Pallas still skips re-DMA for a constant block index).
    """
    index_map = lambda i: (0,) * len(shape)
    if hasattr(pl, "Buffered"):
        try:
            return pl.BlockSpec(shape, index_map, pipeline_mode=pl.Buffered(1))
        except TypeError:
            pass
    return pl.BlockSpec(shape, index_map)


def _vmem_need(tm, D, C_pad, x_itemsize):
    # double-buffered x tile + (worst case double-buffered) bf16 weight
    # + bias + double-buffered f32 output tile.
    return (2 * tm * D * x_itemsize
            + 2 * D * C_pad * 2
            + C_pad * 4
            + 2 * tm * C_pad * 4)


def _choose_tm(B, D, C_pad, x_itemsize):
    if B <= 128:
        # Single resident tile: block equals the full batch dim, so no
        # sublane-divisibility constraint and no padding at all.
        return B
    tm = 512
    while tm > 64 and (_vmem_need(tm, D, C_pad, x_itemsize) > _VMEM_BUDGET
                       or pl.cdiv(B, tm) < 2):
        tm //= 2
    return tm


@functools.partial(jax.jit, static_argnames=("num_classes",))
def linear_probe_head(x, w_t, b2, *, num_classes):
    """Forward pass: y = x @ W^T + b, returned as (B, num_classes) f32.

    x:   (B, embed_dim) f32 (or bf16) -- passed through untouched
    w_t: (embed_dim, C_pad) bf16      -- from prepare_linear_probe_params
    b2:  (1, C_pad) f32               -- from prepare_linear_probe_params
    """
    B, D = x.shape
    C_pad = w_t.shape[1]
    x_itemsize = jnp.dtype(x.dtype).itemsize

    # TODO(synk): K-tile the embed axis (trailing "arbitrary" grid axis + f32
    # accumulator scratch) if D*C_pad ever exceeds the VMEM budget on v7x.
    TM = _choose_tm(B, D, C_pad, x_itemsize)
    grid = (pl.cdiv(B, TM),)

    need = _vmem_need(TM, D, C_pad, x_itemsize)
    vmem_limit = min(max(int(need * 1.3) + (2 << 20), 16 << 20), _VMEM_LIMIT_CAP)

    cost = pl.CostEstimate(
        flops=2 * B * D * C_pad,
        transcendentals=0,
        bytes_accessed=(B * D * x_itemsize     # x read
                        + D * C_pad * 2        # weight read (bf16)
                        + C_pad * 4            # bias read
                        + B * C_pad * 4),      # output write (f32)
    )

    out = pl.pallas_call(
        _linear_probe_kernel,
        out_shape=jax.ShapeDtypeStruct((B, C_pad), jnp.float32),
        grid=grid,
        in_specs=[
            pl.BlockSpec((TM, D), lambda i: (i, 0)),   # x tile streams over batch
            _resident_spec((D, C_pad)),                # weight resident in VMEM
            _resident_spec((1, C_pad)),                # bias resident in VMEM
        ],
        out_specs=pl.BlockSpec((TM, C_pad), lambda i: (i, 0)),  # lane-dense stores
        compiler_params=pltpu.CompilerParams(
            dimension_semantics=("parallel",),          # shard batch across TCs
            vmem_limit_bytes=vmem_limit),
        cost_estimate=cost,
    )(x, w_t, b2)

    # Strip only the zero-padded class columns (no batch padding was ever
    # materialized; a ragged last batch block is masked by Pallas itself).
    return out[:, :num_classes]


if __name__ == "__main__":
    # Small shapes consistent with the module: batch=8, embed_dim=32, classes=5.
    B, D, C = 8, 32, 5
    key = jax.random.PRNGKey(0)
    kx, kw, kb = jax.random.split(key, 3)

    # Deterministic parameter init (mimics nn.Linear uniform(-1/sqrt(D), 1/sqrt(D))).
    bound = 1.0 / (D ** 0.5)
    x = jax.random.normal(kx, (B, D), dtype=jnp.float32)
    weight = jax.random.uniform(kw, (C, D), dtype=jnp.float32,
                                minval=-bound, maxval=bound)
    bias = jax.random.uniform(kb, (C,), dtype=jnp.float32,
                              minval=-bound, maxval=bound)

    # One-time parameter layout prep, then the single-op forward.
    w_t, b2 = prepare_linear_probe_params(weight, bias)
    y = linear_probe_head(x, w_t, b2, num_classes=C)
    y = jax.block_until_ready(y)
    assert y.shape == (B, C)

    # Reference 1: same-semantics check (bf16 operands, f32 accumulation).
    y_ref_bf16 = jnp.dot(x.astype(jnp.bfloat16), weight.T.astype(jnp.bfloat16),
                         preferred_element_type=jnp.float32) + bias
    assert jnp.allclose(y, y_ref_bf16, atol=2e-2, rtol=2e-2), "bf16-ref mismatch"

    # Reference 2: full-precision torch-Linear semantics (loose tol for bf16 operands).
    y_ref_f32 = x @ weight.T + bias
    assert jnp.allclose(y, y_ref_f32, atol=5e-2, rtol=5e-2), "f32-ref mismatch"

    print("KERNEL_OK")
</pallas_src>

<mosaic_0001>
module attributes {stable_mosaic.version = 11 : i64} {
  func.func @_linear_probe_kernel(%arg0: i32, %arg1: memref<8x32xf32, #tpu.memory_space<vmem>>, %arg2: memref<32x128xbf16, #tpu.memory_space<vmem>>, %arg3: memref<1x128xf32, #tpu.memory_space<vmem>>, %arg4: memref<8x128xf32, #tpu.memory_space<vmem>>) attributes {dimension_semantics = [#tpu.dimension_semantics<parallel>], iteration_bounds = array<i64: 1>, scalar_prefetch = 0 : i64, scratch_operands = 0 : i64, tpu.core_type = #tpu.core_type<tc>, window_params = [{transform_indices = @transform_0, window_bounds = array<i64: 8, 32>}, {pipeline_mode = #tpu.pipeline_mode<synchronous>, transform_indices = @transform_1, window_bounds = array<i64: 32, 128>}, {pipeline_mode = #tpu.pipeline_mode<synchronous>, transform_indices = @transform_2, window_bounds = array<i64: 1, 128>}, {transform_indices = @transform_3, window_bounds = array<i64: 8, 128>}]} {
    %c0 = arith.constant 0 : index
    %c0_0 = arith.constant 0 : index
    %0 = vector.load %arg1[%c0, %c0_0] : memref<8x32xf32, #tpu.memory_space<vmem>>, vector<8x32xf32>
    %1 = arith.truncf %0 : vector<8x32xf32> to vector<8x32xbf16>
    %c0_1 = arith.constant 0 : index
    %c0_2 = arith.constant 0 : index
    %2 = vector.load %arg2[%c0_1, %c0_2] : memref<32x128xbf16, #tpu.memory_space<vmem>>, vector<32x128xbf16>
    %cst = arith.constant dense<0.000000e+00> : vector<8x128xf32>
    %3 = tpu.matmul %1, %2, %cst {dimension_numbers = #tpu.dot_dimension_numbers<[1], [0], [0], [1], [0, 0, 1, 1], [], []>} : vector<8x32xbf16>, vector<32x128xbf16>, vector<8x128xf32> -> vector<8x128xf32>
    %c0_3 = arith.constant 0 : index
    %c0_4 = arith.constant 0 : index
    %4 = vector.load %arg3[%c0_3, %c0_4] : memref<1x128xf32, #tpu.memory_space<vmem>>, vector<1x128xf32>
    %5 = vector.broadcast %4 : vector<1x128xf32> to vector<8x128xf32>
    %6 = arith.addf %3, %5 : vector<8x128xf32>
    %c0_5 = arith.constant 0 : index
    %c0_6 = arith.constant 0 : index
    %7 = vector.load %arg4[%c0_5, %c0_6] : memref<8x128xf32, #tpu.memory_space<vmem>>, vector<8x128xf32>
    tpu.vector_store %arg4[%c0_5, %c0_6], %6 {strides = array<i32>} : memref<8x128xf32, #tpu.memory_space<vmem>>, vector<8x128xf32>,
    return
  }
  func.func @transform_0(%arg0: i32) -> (i32, i32) {
    %c0_i32 = arith.constant 0 : i32
    %c0_i32_0 = arith.constant 0 : i32
    return %arg0, %c0_i32 : i32, i32
  }
  func.func @transform_1(%arg0: i32) -> (i32, i32) {
    %c0_i32 = arith.constant 0 : i32
    %c0_i32_0 = arith.constant 0 : i32
    %c0_i32_1 = arith.constant 0 : i32
    return %c0_i32, %c0_i32_0 : i32, i32
  }
  func.func @transform_2(%arg0: i32) -> (i32, i32) {
    %c0_i32 = arith.constant 0 : i32
    %c0_i32_0 = arith.constant 0 : i32
    %c0_i32_1 = arith.constant 0 : i32
    return %c0_i32, %c0_i32_0 : i32, i32
  }
  func.func @transform_3(%arg0: i32) -> (i32, i32) {
    %c0_i32 = arith.constant 0 : i32
    %c0_i32_0 = arith.constant 0 : i32
    return %arg0, %c0_i32 : i32, i32
  }
}

</mosaic_0001>

<llo_original>
// kernel: linear_probe_head.1
$region0: #{linear_probe_head.1}
  #allocation0 [shape = 'u32[]', space=smem, size = 0x4, offset = 0x4, fixed_abs, tag = 'smem constant byte address 0x4 - core index']
  #allocation1 [shape = 'u32[144,128]{1,0:T(1,128)}', space=vmem, size = 0x12000, scoped, tag = 'internal scratch']
  %s0 = inlined_call_operand.hbm [shape: f32[8,32], index: 0, kind: input, shape index: {}]
  %s1 = inlined_call_operand.hbm [shape: bf16[32,128], index: 1, kind: input, shape index: {}]
  %s2 = inlined_call_operand.vmem [shape: f32[1,128], index: 2, kind: input, shape index: {}]
  %s3 = inlined_call_operand.hbm [shape: f32[8,128], index: 3, kind: output, shape index: {}]
  %s4 = sld [smem:[#allocation0]]
  $region30: #{linear_probe_head.1} parent=0
    _
  %s6 = ssub.s32 1, %s4
  %s7 = scalar_select 0, %s6, %s4
  $region1: #{linear_probe_head.1} parent=0
    #allocation2 [shape = 'u8[4096]{0}', space=vmem, size = 0x1000, scoped, tag = 'input window, operand 0, single buffered']
    #allocation3 [shape = 's32[1]{0}', space=sflag, size = 0x4, scoped, tag = 'scoped memory for linear_probe_head.1']
    #allocation4 [shape = 's32[1]{0}', space=sflag, size = 0x4, scoped, tag = 'scoped memory for linear_probe_head.1']
    #allocation5 [shape = 'u8[8192]{0}', space=vmem, size = 0x2000, scoped, tag = 'input window, operand 1, single buffered']
    #allocation6 [shape = 's32[1]{0}', space=sflag, size = 0x4, scoped, tag = 'scoped memory for linear_probe_head.1']
    #allocation7 [shape = 'u8[4096]{0}', space=vmem, size = 0x1000, scoped, tag = 'output window, operand 0, single buffered']
    %8 = vsyncpa [#allocation3], 0
    %9 = vsyncpa [#allocation6], 0
    %10 = vsyncpa [#allocation4], 0
    // Predicated region
    $region2: #{linear_probe_head.1} parent=1 // pred_check
      _
    $region3: #{linear_probe_head.1} parent=1 // pred_check_branch
      %12 = sbr.rel (0) target = $region5
    $region4: #{linear_probe_head.1} parent=1 // pred_region
      %s14 = ssub.s32 128, 128
      %15 = vsyncadd [#allocation3], %s14
      %s17 = sshll.u32 [#allocation2], 4
      %s18 = int_to_ptr.vmem [resolvable:$true] %s17
      %20 = dma.hbm_to_vmem [thread:$0]  %s0, 128, %s18, [#allocation3]
    $region5: #{linear_probe_head.1} parent=1 // pred_fallthru
      _
    // Predicated region
    $region6: #{linear_probe_head.1} parent=1 // pred_check
      _
    $region7: #{linear_probe_head.1} parent=1 // pred_check_branch
      %22 = sbr.rel (0) target = $region9
    $region8: #{linear_probe_head.1} parent=1 // pred_region
      %s24 = ssub.s32 256, 256
      %25 = vsyncadd [#allocation6], %s24
      %s26 = sshll.u32 [#allocation5], 4
      %s27 = int_to_ptr.vmem [resolvable:$true] %s26
      %32 = dma.hbm_to_vmem [thread:$0]  %s1, 256, %s27, [#allocation6], 64, 64, 4
    $region9: #{linear_probe_head.1} parent=1 // pred_fallthru
      _
    // Predicated region
    $region10: #{linear_probe_head.1} parent=1 // pred_check
      _
    $region11: #{linear_probe_head.1} parent=1 // pred_check_branch
      %34 = sbr.rel (0) target = $region13
    $region12: #{linear_probe_head.1} parent=1 // pred_region
      _
    $region13: #{linear_probe_head.1} parent=1 // pred_fallthru
      _
    // Predicated region
    $region14: #{linear_probe_head.1} parent=1 // pred_check
      _
    $region15: #{linear_probe_head.1} parent=1 // pred_check_branch
      %36 = sbr.rel (0) target = $region17
    $region16: #{linear_probe_head.1} parent=1 // pred_region
      %37 = dma.done [#allocation3], 128
    $region17: #{linear_probe_head.1} parent=1 // pred_fallthru
      _
    // Predicated region
    $region18: #{linear_probe_head.1} parent=1 // pred_check
      _
    $region19: #{linear_probe_head.1} parent=1 // pred_check_branch
      %39 = sbr.rel (0) target = $region21
    $region20: #{linear_probe_head.1} parent=1 // pred_region
      %40 = dma.done [#allocation6], 256
    $region21: #{linear_probe_head.1} parent=1 // pred_fallthru
      _
    %v42 = vld [vmem:[#allocation2] sm:$0xff]
    %v43 = vpack.c.bf16 %v42, %v42
    %v44 = vld [vmem:[#allocation5] sm:$0xf]
    %v45 = vld [vmem:[#allocation5 + $0x4] sm:$0xf]
    %v46 = vld [vmem:[#allocation5 + $0x8] sm:$0xf]
    %v47 = vld [vmem:[#allocation5 + $0xc] sm:$0xf]
    %v48 = vld [vmem:[%s2] sm:$0x1]
    %v50 = vlaneseq
    %v51 = vshrl.u32 %v50, 7
    %v52 = vsub.s32 0, %v51
    %v53 = vrot.slane %v48, %v52
    %v59 = vunpack.c.l.b16 %v44
    %v60 = vunpack.c.l.b16 %v45
    %v61 = vunpack.c.l.b16 %v46
    %v62 = vunpack.c.l.b16 %v47
    %v63 = vpack.c.b16 %v60, %v59
    %v64 = vpack.c.b16 %v62, %v61
    %vm67 = vcmask 261120
    %v69 = vsel %vm67, %v43, 0
    %71 = vmatprep.subr.bf16.mxu0 0
    %72 = vmatpush1.bf16.msra.mxu0 0
    %73 = vmatprep.subr.bf16.mxu0 0
    %74 = vmatpush1.bf16.msra.mxu0 0
    %75 = vmatprep.subr.bf16.mxu0 0
    %76 = vmatpush1.bf16.msra.mxu0 0
    %77 = vmatprep.subr.bf16.mxu0 0
    %78 = vmatpush1.bf16.msra.mxu0 0
    %79 = vmatprep.subr.bf16.mxu0 0
    %80 = vmatpush1.bf16.msra.mxu0 0
    %81 = vmatprep.subr.bf16.mxu0 0
    %82 = vmatpush1.bf16.msra.mxu0 0
    %83 = vmatprep.subr.bf16.mxu0 0
    %84 = vmatpush1.bf16.msra.mxu0 %v64
    %85 = vmatprep.subr.bf16.mxu0 0
    %86 = vmatpush1.bf16.msra.mxu0 %v63
    %87 = vmatprep.subr.bf16.mxu0 0
    %88 = vmatpush2.bf16.msra.mxu0 0
    %89 = vmatprep.subr.bf16.mxu0 0
    %90 = vmatpush2.bf16.msra.mxu0 0
    %91 = vmatprep.subr.bf16.mxu0 0
    %92 = vmatpush2.bf16.msra.mxu0 0
    %93 = vmatprep.subr.bf16.mxu0 0
    %94 = vmatpush2.bf16.msra.mxu0 0
    %95 = vmatprep.subr.bf16.mxu0 0
    %96 = vmatpush2.bf16.msra.mxu0 0
    %97 = vmatprep.subr.bf16.mxu0 0
    %98 = vmatpush2.bf16.msra.mxu0 0
    %99 = vmatprep.subr.bf16.mxu0 0
    %100 = vmatpush2.bf16.msra.mxu0 0
    %101 = vmatprep.subr.bf16.mxu0 0
    %102 = vmatpush2.bf16.msra.mxu0 0
    %103 = vmatprep.mubr.bf16.mxu0 0
    %104 = vmatmul.mubr.bf16.gmra.mxu0 %v69
    %v105 = vpop.f32.mrf.mxu0
    %v106 = vadd.f32 %v53, %v105
    %v107 = vpop.f32.mrf.mxu0
    %v108 = vpop.f32.mrf.mxu0
    %v109 = vpop.f32.mrf.mxu0
    %110 = vdwg.mxu0
    %111 = vst [vmem:[#allocation7] sm:$0xff] %v106
    // Predicated region
    $region22: #{linear_probe_head.1} parent=1 // pred_check
      _
    $region23: #{linear_probe_head.1} parent=1 // pred_check_branch
      %113 = sbr.rel (0) target = $region25
    $region24: #{linear_probe_head.1} parent=1 // pred_region
      %s115 = ssub.s32 128, 128
      %116 = vsyncadd [#allocation4], %s115
      %s118 = sshll.u32 [#allocation7], 4
      %s119 = int_to_ptr.vmem [resolvable:$true] %s118
      %121 = dma.vmem_to_hbm [thread:$0]  %s119, 128, %s3, [#allocation4]
    $region25: #{linear_probe_head.1} parent=1 // pred_fallthru
      _
    // Predicated region
    $region26: #{linear_probe_head.1} parent=1 // pred_check
      _
    $region27: #{linear_probe_head.1} parent=1 // pred_check_branch
      %123 = sbr.rel (0) target = $region29
    $region28: #{linear_probe_head.1} parent=1 // pred_region
      %124 = dma.done [#allocation4], 128
    $region29: #{linear_probe_head.1} parent=1 // pred_fallthru
      _
    %125 = vsyncpa [#allocation3], 1
    %126 = vsyncpa [#allocation6], 1
    %127 = vsyncpa [#allocation4], 1

</llo_original>
